<compile_context>
chip_gen: v5e
topology: v5e:2x2
jax: 0.10.0
libtpu: 0.0.40
codegen_flags: <defaults>
</compile_context>

<pallas_src>
import functools

import jax
import jax.numpy as jnp
from jax import lax
from jax.experimental import pallas as pl
from jax.experimental.pallas import tpu as pltpu

_PALLAS_MIN_ELEMS = 1 << 19   # below ~512K elems a fused XLA mean((x-t)**2) wins


def _round_down8(a):
    return max(8, (a // 8) * 8)


@functools.lru_cache(maxsize=1)
def _num_tensorcores():
    """Trace-time TensorCores-per-chip (2 => v7x-style); safe fallback = 1."""
    try:
        info = pltpu.get_tpu_info()
    except Exception:
        return 1
    for attr in ("num_cores", "num_tensorcores", "tensorcores_per_chip",
                 "num_cores_per_chip", "cores_per_chip", "core_count"):
        v = getattr(info, attr, None)
        if isinstance(v, int) and v > 0:
            return v
    return 1


def _make_mse_kernel(rows, tm, lane, blocks_per_split, needs_mask):
    """Partial-sum kernel: accumulates sum((x-t)^2) into an (8, lane) out block."""

    def kernel(x_ref, t_ref, out_ref):
        i = pl.program_id(1)   # inner (reduction / "arbitrary") axis

        @pl.when(i == 0)
        def _init():
            out_ref[...] = jnp.zeros_like(out_ref)

        x = x_ref[...].astype(jnp.float32)   # f32 math (v5e has no bf16 VPU)
        t = t_ref[...].astype(jnp.float32)
        d = x - t
        dd = d * d

        if needs_mask:
            # Nominal (unclamped) first row of this grid cell; rows at/after the
            # true row count contribute 0 (partial edge block or duplicate block
            # introduced by the split axis).
            c = pl.program_id(0)
            row0 = (c * blocks_per_split + i) * tm
            local = lax.broadcasted_iota(jnp.int32, (tm, 1), 0)
            dd = jnp.where(local + row0 < rows, dd, 0.0)

        # Sublane fold into the fixed, tm-independent (8, lane) accumulator.
        out_ref[...] += jnp.sum(dd.reshape(tm // 8, 8, lane), axis=0)

    return kernel


def _mse_sum_pallas(x2d, t2d, rows, lane, *, num_splits, tile_bytes, vmem_limit):
    """Sum of squared differences over a [rows, lane] slab (grid-padded, masked)."""
    in_bytes = jnp.dtype(x2d.dtype).itemsize
    tm_cap = max(8, (tile_bytes // (lane * in_bytes)) // 8 * 8)
    tm = min(tm_cap, _round_down8(rows))
    # Keep >=4 inner steps per split so double buffering reaches steady state.
    while tm >= 128 and pl.cdiv(pl.cdiv(rows, tm), num_splits) < 4:
        tm = _round_down8(tm // 2)

    total_blocks = pl.cdiv(rows, tm)
    blocks_per_split = pl.cdiv(total_blocks, num_splits)
    needs_mask = num_splits * blocks_per_split * tm != rows

    def in_map(c, i):
        # Clamp so duplicate / edge grid cells always DMA an in-bounds block;
        # their out-of-range rows are masked to zero inside the kernel.
        return (jnp.minimum(c * blocks_per_split + i, total_blocks - 1), 0)

    kernel = _make_mse_kernel(rows, tm, lane, blocks_per_split, needs_mask)

    partials = pl.pallas_call(
        kernel,
        out_shape=jax.ShapeDtypeStruct((num_splits, 8, lane), jnp.float32),
        grid=(num_splits, blocks_per_split),
        in_specs=[
            pl.BlockSpec((tm, lane), in_map),
            pl.BlockSpec((tm, lane), in_map),
        ],
        out_specs=pl.BlockSpec((None, 8, lane), lambda c, i: (c, 0, 0)),
        compiler_params=pltpu.CompilerParams(
            dimension_semantics=("parallel", "arbitrary"),
            vmem_limit_bytes=vmem_limit),
    )(x2d, t2d)

    # Single cross-lane reduce of the tiny per-split partials, in the wrapper.
    return jnp.sum(partials)


def _mse_pallas(x, t):
    """Streaming MSE: mean over the TRUE element count, partial sums on TPU."""
    n_true = x.size
    xf = x.reshape(-1)
    tf = t.reshape(-1)

    # Largest lane width in {512, 256, 128} dividing n (prefer >=8 rows) so the
    # 2-D view is a free bitcast; otherwise a 512-wide body + <512-elem tail.
    lane = None
    for cand in (512, 256, 128):
        if n_true % cand == 0 and n_true // cand >= 8:
            lane = cand
            break
    if lane is None:
        for cand in (512, 256, 128):
            if n_true % cand == 0:
                lane = cand
                break
    if lane is None:
        lane = 512
    rows = n_true // lane
    tail = n_true - rows * lane

    if rows < 8:
        # Sub-vreg-height problem: a custom kernel cannot help; pure XLA.
        x32 = xf.astype(jnp.float32)
        t32 = tf.astype(jnp.float32)
        return jnp.mean((x32 - t32) ** 2)

    tail_sum = jnp.float32(0.0)
    if tail:
        xt = xf[rows * lane:].astype(jnp.float32)
        tt = tf[rows * lane:].astype(jnp.float32)
        tail_sum = jnp.sum((xt - tt) ** 2)

    if tail:
        # NOTE: only when n % 128 != 0; the prefix slice may cost one XLA copy.
        xb = xf[:rows * lane]
        tb = tf[:rows * lane]
    else:
        xb, tb = xf, tf
    x2d = xb.reshape(rows, lane)
    t2d = tb.reshape(rows, lane)

    multi_tc = _num_tensorcores() >= 2
    num_splits = 2 if multi_tc else 1            # 2 TCs only on v7x-style chips
    tile_bytes = (4 << 20) if multi_tc else (2 << 20)   # per input per buffer
    vmem_limit = (48 << 20) if multi_tc else (32 << 20)

    main_sum = _mse_sum_pallas(
        x2d, t2d, rows, lane,
        num_splits=num_splits, tile_bytes=tile_bytes, vmem_limit=vmem_limit)

    return (main_sum + tail_sum) / jnp.float32(n_true)


def content_loss(input_arr, target_arr, *, force_pallas=False):
    """Mirrors ContentLoss.forward: returns (input unchanged, mse loss)."""
    assert input_arr.shape == target_arr.shape
    if not force_pallas and input_arr.size < _PALLAS_MIN_ELEMS:
        # Small feature maps: a fused XLA mean beats any custom-call overhead.
        x32 = input_arr.astype(jnp.float32)
        t32 = target_arr.astype(jnp.float32)
        return input_arr, jnp.mean((x32 - t32) ** 2)
    return input_arr, _mse_pallas(input_arr, target_arr)


if __name__ == "__main__":
    key = jax.random.PRNGKey(0)
    k1, k2, k3, k4, k5, k6, k7, k8 = jax.random.split(key, 8)

    # Required small shape (NCHW = [2, 4, 16, 16]); force the Pallas path so
    # the kernel itself (lane pick, single-block grid) is exercised.
    x_s = jax.random.normal(k1, (2, 4, 16, 16), dtype=jnp.float32)
    t_s = jax.random.normal(k2, (2, 4, 16, 16), dtype=jnp.float32)
    out_s, loss_s = content_loss(x_s, t_s, force_pallas=True)
    loss_s = jax.block_until_ready(loss_s)
    out_s = jax.block_until_ready(out_s)
    ref_s = jnp.mean((x_s - t_s) ** 2)
    assert jnp.allclose(loss_s, ref_s, rtol=1e-5, atol=1e-6), (loss_s, ref_s)
    assert jnp.array_equal(out_s, x_s)            # forward returns input unchanged

    # Non-multiple-of-512 flat size (2*4*16*17 = 2176 = 17*128): narrower lane
    # pick, partial edge block + in-kernel row masking, still zero-copy.
    x_o = jax.random.normal(k3, (2, 4, 16, 17), dtype=jnp.float32)
    t_o = jax.random.normal(k4, (2, 4, 16, 17), dtype=jnp.float32)
    _, loss_o = content_loss(x_o, t_o, force_pallas=True)
    loss_o = jax.block_until_ready(loss_o)
    ref_o = jnp.mean((x_o - t_o) ** 2)
    assert jnp.allclose(loss_o, ref_o, rtol=1e-5, atol=1e-6), (loss_o, ref_o)

    # Size not divisible by 128 (2*4*30*31 = 7440): exercises the XLA tail path
    # plus the masked Pallas body.
    x_t = jax.random.normal(k5, (2, 4, 30, 31), dtype=jnp.float32)
    t_t = jax.random.normal(k6, (2, 4, 30, 31), dtype=jnp.float32)
    _, loss_t = content_loss(x_t, t_t, force_pallas=True)
    loss_t = jax.block_until_ready(loss_t)
    ref_t = jnp.mean((x_t - t_t) ** 2)
    assert jnp.allclose(loss_t, ref_t, rtol=1e-5, atol=1e-6), (loss_t, ref_t)

    # Mid-size VGG-style feature map (natural dispatch path): multi-step
    # "arbitrary" axis, partial last block, steady-state double buffering.
    x_m = jax.random.normal(k7, (1, 32, 224, 224), dtype=jnp.float32)
    t_m = jax.random.normal(k8, (1, 32, 224, 224), dtype=jnp.float32)
    out_m, loss_m = content_loss(x_m, t_m)
    loss_m = jax.block_until_ready(loss_m)
    out_m = jax.block_until_ready(out_m)
    ref_m = jnp.mean((x_m - t_m) ** 2)
    assert jnp.allclose(loss_m, ref_m, rtol=1e-5, atol=1e-6), (loss_m, ref_m)

    print("KERNEL_OK")
</pallas_src>

<mosaic_0001>
module attributes {stable_mosaic.version = 11 : i64} {
  func.func @kernel(%arg0: i32, %arg1: i32, %arg2: memref<8x256xf32, #tpu.memory_space<vmem>>, %arg3: memref<8x256xf32, #tpu.memory_space<vmem>>, %arg4: memref<1x8x256xf32, #tpu.memory_space<vmem>>) attributes {dimension_semantics = [#tpu.dimension_semantics<parallel>, #tpu.dimension_semantics<arbitrary>], iteration_bounds = array<i64: 1, 1>, scalar_prefetch = 0 : i64, scratch_operands = 0 : i64, tpu.core_type = #tpu.core_type<tc>, window_params = [{transform_indices = @transform_0, window_bounds = array<i64: 8, 256>}, {transform_indices = @transform_1, window_bounds = array<i64: 8, 256>}, {transform_indices = @transform_2, window_bounds = array<i64: 1, 8, 256>}]} {
    %c0_i32 = arith.constant 0 : i32
    %0 = arith.cmpi eq, %arg1, %c0_i32 : i32
    %1 = arith.extui %0 : i1 to i32
    %c0_i32_0 = arith.constant 0 : i32
    %2 = arith.cmpi ne, %1, %c0_i32_0 : i32
    scf.if %2 {
      %cst_10 = arith.constant 0.000000e+00 : f32
      %15 = vector.broadcast %cst_10 : f32 to vector<8x256xf32>
      %c0_11 = arith.constant 0 : index
      %c0_12 = arith.constant 0 : index
      %c0_13 = arith.constant 0 : index
      %16 = vector.load %arg4[%c0_11, %c0_12, %c0_13] : memref<1x8x256xf32, #tpu.memory_space<vmem>>, vector<1x8x256xf32>
      %17 = vector.shape_cast %16 : vector<1x8x256xf32> to vector<8x256xf32>
      %18 = vector.shape_cast %15 : vector<8x256xf32> to vector<1x8x256xf32>
      tpu.vector_store %arg4[%c0_11, %c0_12, %c0_13], %18 {strides = array<i32>} : memref<1x8x256xf32, #tpu.memory_space<vmem>>, vector<1x8x256xf32>,
    } else {
    }
    %c0 = arith.constant 0 : index
    %c0_1 = arith.constant 0 : index
    %3 = vector.load %arg2[%c0, %c0_1] : memref<8x256xf32, #tpu.memory_space<vmem>>, vector<8x256xf32>
    %c0_2 = arith.constant 0 : index
    %c0_3 = arith.constant 0 : index
    %4 = vector.load %arg3[%c0_2, %c0_3] : memref<8x256xf32, #tpu.memory_space<vmem>>, vector<8x256xf32>
    %5 = arith.subf %3, %4 : vector<8x256xf32>
    %6 = arith.mulf %5, %5 : vector<8x256xf32>
    %c0_4 = arith.constant 0 : index
    %c0_5 = arith.constant 0 : index
    %c0_6 = arith.constant 0 : index
    %7 = vector.load %arg4[%c0_4, %c0_5, %c0_6] : memref<1x8x256xf32, #tpu.memory_space<vmem>>, vector<1x8x256xf32>
    %8 = vector.shape_cast %7 : vector<1x8x256xf32> to vector<8x256xf32>
    %9 = vector.shape_cast %6 : vector<8x256xf32> to vector<1x8x256xf32>
    %cst = arith.constant dense<0.000000e+00> : vector<8x256xf32>
    %10 = vector.multi_reduction <add>, %9, %cst [0] : vector<1x8x256xf32> to vector<8x256xf32>
    %11 = arith.addf %8, %10 : vector<8x256xf32>
    %c0_7 = arith.constant 0 : index
    %c0_8 = arith.constant 0 : index
    %c0_9 = arith.constant 0 : index
    %12 = vector.load %arg4[%c0_7, %c0_8, %c0_9] : memref<1x8x256xf32, #tpu.memory_space<vmem>>, vector<1x8x256xf32>
    %13 = vector.shape_cast %12 : vector<1x8x256xf32> to vector<8x256xf32>
    %14 = vector.shape_cast %11 : vector<8x256xf32> to vector<1x8x256xf32>
    tpu.vector_store %arg4[%c0_7, %c0_8, %c0_9], %14 {strides = array<i32>} : memref<1x8x256xf32, #tpu.memory_space<vmem>>, vector<1x8x256xf32>,
    return
  }
  func.func @transform_0(%arg0: i32, %arg1: i32) -> (i32, i32) {
    %c1_i32 = arith.constant 1 : i32
    %0 = arith.muli %arg0, %c1_i32 : i32
    %1 = arith.addi %0, %arg1 : i32
    %c0_i32 = arith.constant 0 : i32
    %2 = arith.minsi %1, %c0_i32 : i32
    %c0_i32_0 = arith.constant 0 : i32
    %c0_i32_1 = arith.constant 0 : i32
    return %2, %c0_i32_0 : i32, i32
  }
  func.func @transform_1(%arg0: i32, %arg1: i32) -> (i32, i32) {
    %c1_i32 = arith.constant 1 : i32
    %0 = arith.muli %arg0, %c1_i32 : i32
    %1 = arith.addi %0, %arg1 : i32
    %c0_i32 = arith.constant 0 : i32
    %2 = arith.minsi %1, %c0_i32 : i32
    %c0_i32_0 = arith.constant 0 : i32
    %c0_i32_1 = arith.constant 0 : i32
    return %2, %c0_i32_0 : i32, i32
  }
  func.func @transform_2(%arg0: i32, %arg1: i32) -> (i32, i32, i32) {
    %c0_i32 = arith.constant 0 : i32
    %c0_i32_0 = arith.constant 0 : i32
    %c0_i32_1 = arith.constant 0 : i32
    return %arg0, %c0_i32, %c0_i32_0 : i32, i32, i32
  }
}

</mosaic_0001>

<llo_original>
// kernel: tpu_custom_call.1
$region0: #{tpu_custom_call.1}
  #allocation0 [shape = 'u32[]', space=smem, size = 0x4, offset = 0x4, fixed_abs, tag = 'smem constant byte address 0x4 - core index']
  #allocation1 [shape = 'u32[72,128]{1,0:T(1,128)}', space=vmem, size = 0x9000, scoped, tag = 'internal scratch']
  %s0 = inlined_call_operand.hbm [shape: f32[8,256], index: 0, kind: input, shape index: {}]
  %s1 = inlined_call_operand.hbm [shape: f32[8,256], index: 1, kind: input, shape index: {}]
  %s2 = inlined_call_operand.hbm [shape: f32[1,8,256], index: 2, kind: output, shape index: {}]
  %s3 = sld [smem:[#allocation0]]
  $region30: #{tpu_custom_call.1} parent=0
    _
  %s5 = ssub.s32 1, %s3
  %s6 = scalar_select 0, %s5, %s3
  $region1: #{tpu_custom_call.1} parent=0
    #allocation2 [shape = 'u8[8192]{0}', space=vmem, size = 0x2000, scoped, tag = 'input window, operand 0, single buffered']
    #allocation3 [shape = 's32[1]{0}', space=sflag, size = 0x4, scoped, tag = 'scoped memory for tpu_custom_call.1']
    #allocation4 [shape = 's32[1]{0}', space=sflag, size = 0x4, scoped, tag = 'scoped memory for tpu_custom_call.1']
    #allocation5 [shape = 'u8[8192]{0}', space=vmem, size = 0x2000, scoped, tag = 'input window, operand 1, single buffered']
    #allocation6 [shape = 's32[1]{0}', space=sflag, size = 0x4, scoped, tag = 'scoped memory for tpu_custom_call.1']
    #allocation7 [shape = 'u8[8192]{0}', space=vmem, size = 0x2000, scoped, tag = 'output window, operand 0, single buffered']
    %7 = vsyncpa [#allocation3], 0
    %8 = vsyncpa [#allocation6], 0
    %9 = vsyncpa [#allocation4], 0
    // Predicated region
    $region2: #{tpu_custom_call.1} parent=1 // pred_check
      _
    $region3: #{tpu_custom_call.1} parent=1 // pred_check_branch
      %11 = sbr.rel (0) target = $region5
    $region4: #{tpu_custom_call.1} parent=1 // pred_region
      %s12 = sadd.s32 0, 0
      %p13 = scmp.lt.s32.totalorder %s12, 0
      %s14 = scalar_select %p13, %s12, 0
      %16 = vsyncadd [#allocation3], 0
      %s17 = smul.addr %s14, 2
      %s18 = smul.addr %s17, 8
      %s19 = scalar_lea.hbm %s0, %s18
      %s21 = sshll.u32 %s19, 4
      %s22 = int_to_ptr.hbm [resolvable:$true] %s21
      %s23 = sshll.u32 [#allocation2], 4
      %s24 = int_to_ptr.vmem [resolvable:$true] %s23
      %26 = dma.hbm_to_vmem [thread:$0]  %s22, 256, %s24, [#allocation3]
    $region5: #{tpu_custom_call.1} parent=1 // pred_fallthru
      _
    // Predicated region
    $region6: #{tpu_custom_call.1} parent=1 // pred_check
      _
    $region7: #{tpu_custom_call.1} parent=1 // pred_check_branch
      %28 = sbr.rel (0) target = $region9
    $region8: #{tpu_custom_call.1} parent=1 // pred_region
      %s29 = sadd.s32 0, 0
      %p30 = scmp.lt.s32.totalorder %s29, 0
      %s31 = scalar_select %p30, %s29, 0
      %33 = vsyncadd [#allocation6], 0
      %s34 = smul.addr %s31, 2
      %s35 = smul.addr %s34, 8
      %s36 = scalar_lea.hbm %s1, %s35
      %s38 = sshll.u32 %s36, 4
      %s39 = int_to_ptr.hbm [resolvable:$true] %s38
      %s40 = sshll.u32 [#allocation5], 4
      %s41 = int_to_ptr.vmem [resolvable:$true] %s40
      %43 = dma.hbm_to_vmem [thread:$0]  %s39, 256, %s41, [#allocation6]
    $region9: #{tpu_custom_call.1} parent=1 // pred_fallthru
      _
    // Predicated region
    $region10: #{tpu_custom_call.1} parent=1 // pred_check
      _
    $region11: #{tpu_custom_call.1} parent=1 // pred_check_branch
      %45 = sbr.rel (0) target = $region13
    $region12: #{tpu_custom_call.1} parent=1 // pred_region
      %47 = dma.done [#allocation3], 256
    $region13: #{tpu_custom_call.1} parent=1 // pred_fallthru
      _
    // Predicated region
    $region14: #{tpu_custom_call.1} parent=1 // pred_check
      _
    $region15: #{tpu_custom_call.1} parent=1 // pred_check_branch
      %49 = sbr.rel (0) target = $region17
    $region16: #{tpu_custom_call.1} parent=1 // pred_region
      %51 = dma.done [#allocation6], 256
    $region17: #{tpu_custom_call.1} parent=1 // pred_fallthru
      _
    %s52 = sadd.s32 0, 0
    %p53 = scmp.lt.s32.totalorder %s52, 0
    %s54 = scalar_select %p53, %s52, 0
    %s55 = sadd.s32 0, 0
    %p56 = scmp.lt.s32.totalorder %s55, 0
    %s57 = scalar_select %p56, %s55, 0
    %p58 = scmp.eq.s32.totalorder 0, 0
    // Predicated region
    $region18: #{tpu_custom_call.1} parent=1 // pred_check
      %p59 = pneg %p58
    $region19: #{tpu_custom_call.1} parent=1 // pred_check_branch
      %61 = sbr.rel (%p59) target = $region21
    $region20: #{tpu_custom_call.1} parent=1 // pred_region
      %62 = vst [vmem:[#allocation7] sm:$0xff] 0.0
      %63 = vst [vmem:[#allocation7 + $0x8] sm:$0xff] 0.0
    $region21: #{tpu_custom_call.1} parent=1 // pred_fallthru
      _
    %v64 = vld [vmem:[#allocation2] sm:$0xff]
    %v65 = vld [vmem:[#allocation2 + $0x8] sm:$0xff]
    %v66 = vld [vmem:[#allocation5] sm:$0xff]
    %v67 = vld [vmem:[#allocation5 + $0x8] sm:$0xff]
    %v68 = vsub.f32 %v64, %v66
    %v69 = vsub.f32 %v65, %v67
    %v70 = vmul.f32 %v68, %v68
    %v71 = vmul.f32 %v69, %v69
    %v72 = vld [vmem:[#allocation7] sm:$0xff]
    %v73 = vld [vmem:[#allocation7 + $0x8] sm:$0xff]
    %v74 = vadd.f32 %v70, 0.0
    %v75 = vadd.f32 %v71, 0.0
    %v76 = vadd.f32 %v72, %v74
    %v77 = vadd.f32 %v73, %v75
    %78 = vst [vmem:[#allocation7] sm:$0xff] %v76
    %79 = vst [vmem:[#allocation7 + $0x8] sm:$0xff] %v77
    // Predicated region
    $region22: #{tpu_custom_call.1} parent=1 // pred_check
      _
    $region23: #{tpu_custom_call.1} parent=1 // pred_check_branch
      %81 = sbr.rel (0) target = $region25
    $region24: #{tpu_custom_call.1} parent=1 // pred_region
      %83 = vsyncadd [#allocation4], 0
      %s85 = sshll.u32 [#allocation7], 4
      %s86 = int_to_ptr.vmem [resolvable:$true] %s85
      %s87 = sshll.u32 %s2, 4
      %s88 = int_to_ptr.hbm [resolvable:$true] %s87
      %90 = dma.vmem_to_hbm [thread:$0]  %s86, 256, %s88, [#allocation4]
    $region25: #{tpu_custom_call.1} parent=1 // pred_fallthru
      _
    // Predicated region
    $region26: #{tpu_custom_call.1} parent=1 // pred_check
      _
    $region27: #{tpu_custom_call.1} parent=1 // pred_check_branch
      %92 = sbr.rel (0) target = $region29
    $region28: #{tpu_custom_call.1} parent=1 // pred_region
      %94 = dma.done [#allocation4], 256
    $region29: #{tpu_custom_call.1} parent=1 // pred_fallthru
      _
    %95 = vsyncpa [#allocation3], 1
    %96 = vsyncpa [#allocation6], 1
    %97 = vsyncpa [#allocation4], 1

</llo_original>
